<compile_context>
chip_gen: v7x
topology: tpu7x:2x2x1
jax: 0.10.0
libtpu: 0.0.40
codegen_flags: <defaults>
</compile_context>

<pallas_src>
import math

import jax
import jax.numpy as jnp
from jax.experimental import pallas as pl
from jax.experimental.pallas import tpu as pltpu

_LANE = 128
_MIN_TILE_BYTES = 1 << 20       # only enforce >=8 grid steps while tiles stay >= 1 MiB
_MAX_GAMMA_ROWS = 1024          # pattern-block cap; pathological D falls back to masked path


def _lcm(a: int, b: int) -> int:
    return a // math.gcd(a, b) * b


def _sublane_align(dtype) -> int:
    # rows per packed sublane group: 8 for 32-bit, 16 for 16-bit, 32 for 8-bit dtypes
    return 8 * (4 // max(1, jnp.dtype(dtype).itemsize))


def _vmem_budget():
    """(tile_vmem_budget_bytes, vmem_limit_bytes) per TPU generation."""
    try:
        cap = pltpu.get_tpu_info().vmem_capacity_bytes
    except Exception:
        cap = 64 << 20                      # unknown -> assume smallest (v7x-class)
    if cap <= (64 << 20):                   # v7x: 64 MiB VMEM
        return 28 << 20, 48 << 20
    return 56 << 20, 96 << 20               # v5e / v6e: 128 MiB VMEM


def _layerscale_kernel(x_ref, g_ref, o_ref):
    """y = x * gamma, gamma given as a (GH, W) pattern block.

    GH == 1       -> plain sublane broadcast.
    GH == tile TN -> direct elementwise multiply.
    otherwise     -> tile rows grouped into TN // GH pattern periods
                     (wrapper guarantees TN % GH == 0 and GH % 8 == 0,
                      so the reshape stays (8,128)-tile aligned).
    Compute in f32 (keeps fp32-gamma precision for bf16 activations); only the
    result is cast back to the output dtype.
    """
    x = x_ref[...].astype(jnp.float32)
    g = g_ref[...]
    tn, w = x.shape
    gh = g.shape[0]
    if gh == 1 or gh == tn:
        y = x * g
    else:
        y = (x.reshape(tn // gh, gh, w) * g).reshape(tn, w)
    o_ref[...] = y.astype(o_ref.dtype)


def layer_scale(x: jax.Array, gamma: jax.Array) -> jax.Array:
    """LayerScale forward: y = x * gamma, gamma shape (dim,) broadcast over leading axes."""
    orig_shape = x.shape
    D = orig_shape[-1]
    assert gamma.shape == (D,), f"gamma must have shape ({D},), got {gamma.shape}"
    if x.size == 0:
        return x

    total = x.size
    gamma_f32 = gamma.astype(jnp.float32)
    align = _sublane_align(x.dtype)

    # ---- choose a lane-dense 2D layout (rows, W) + gamma pattern block ------
    use_packed = (total % _LANE == 0)
    if use_packed:
        P = _lcm(D, _LANE) // _LANE         # gamma pattern period, in 128-lane rows
        GH = 1 if P == 1 else _lcm(P, align)
        if GH > _MAX_GAMMA_ROWS:
            use_packed = False

    if use_packed:
        W = _LANE
        rows = total // _LANE
        if P > 1 and rows < GH:
            GH = rows                       # tiny input: single-block pattern covers it
        if GH == 1:                         # D divides 128 (incl. D == 128)
            g_pat = jnp.tile(gamma_f32, _LANE // D).reshape(1, W)
        else:
            g_pat = jnp.tile(gamma_f32, GH * _LANE // D).reshape(GH, W)
    else:
        # Fallback: keep D on the lane axis (may use masked partial stores).
        W = D
        rows = total // D
        GH = 1
        g_pat = gamma_f32.reshape(1, D)

    x2d = x.reshape(rows, W)

    # ---- tile the row axis by BYTES with a per-generation VMEM budget -------
    bytes_per = jnp.dtype(x.dtype).itemsize
    tile_budget, vmem_limit = _vmem_budget()
    # per-element VMEM: double-buffered in + out tiles, plus an f32 temp for sub-32-bit x
    per_elem = 4 * bytes_per + (4 if bytes_per < 4 else 0)
    tn = max(1, tile_budget // (per_elem * W))

    unit = GH if GH > 1 else align          # row-alignment unit for non-full blocks
    if rows <= unit:
        tn = rows                           # single full-extent block (any size ok)
    else:
        tn = min(tn, rows)
        # keep >= ~8 grid steps (megacore sharding / DMA overlap) when worthwhile
        cap8 = (rows // (8 * unit)) * unit
        if cap8 >= unit and cap8 * W * bytes_per >= _MIN_TILE_BYTES:
            tn = min(tn, cap8)
        tn = max(unit, (tn // unit) * unit)
        if tn >= rows:
            tn = (rows // unit) * unit      # stay pattern/sublane aligned; last block partial

    grid = (pl.cdiv(rows, tn),)

    out2d = pl.pallas_call(
        _layerscale_kernel,
        out_shape=jax.ShapeDtypeStruct((rows, W), x.dtype),
        grid_spec=pltpu.PrefetchScalarGridSpec(
            num_scalar_prefetch=0,
            grid=grid,
            in_specs=[
                pl.BlockSpec((tn, W), lambda i: (i, 0)),
                pl.BlockSpec(g_pat.shape, lambda i: (0, 0)),   # gamma pattern stays resident
            ],
            out_specs=pl.BlockSpec((tn, W), lambda i: (i, 0)),
        ),
        compiler_params=pltpu.CompilerParams(
            dimension_semantics=("parallel",),
            vmem_limit_bytes=vmem_limit,
        ),
    )(x2d, g_pat)

    return out2d.reshape(orig_shape)


if __name__ == "__main__":
    init_values = 1e-5

    # Check 1: D=32 (128 % D == 0 lane-packing path), f32 activations.
    dim = 32
    gamma = init_values * jnp.ones((dim,), dtype=jnp.float32)
    x = jax.random.normal(jax.random.PRNGKey(0), (2, 8, dim), dtype=jnp.float32)
    y = layer_scale(x, gamma)
    jax.block_until_ready(y)
    y_ref = x * gamma
    assert y.shape == x.shape and y.dtype == x.dtype
    assert jnp.allclose(y, y_ref, rtol=1e-6, atol=1e-6)

    # Check 2: D=128, bf16 activations (f32-gamma precision inside the kernel).
    dim2 = 128
    gamma2 = init_values * jnp.ones((dim2,), dtype=jnp.float32)
    x2 = jax.random.normal(jax.random.PRNGKey(0), (2, 8, dim2), dtype=jnp.bfloat16)
    y2 = layer_scale(x2, gamma2)
    jax.block_until_ready(y2)
    y2_ref = (x2.astype(jnp.float32) * gamma2).astype(jnp.bfloat16)
    assert y2.shape == x2.shape and y2.dtype == x2.dtype
    assert jnp.allclose(y2.astype(jnp.float32), y2_ref.astype(jnp.float32),
                        rtol=1e-2, atol=1e-6)

    # Check 3: D=192 (neither divides nor is divisible by 128) -> lcm pattern path.
    dim3 = 192
    gamma3 = init_values * jnp.ones((dim3,), dtype=jnp.float32)
    x3 = jax.random.normal(jax.random.PRNGKey(0), (4, 16, dim3), dtype=jnp.float32)
    y3 = layer_scale(x3, gamma3)
    jax.block_until_ready(y3)
    y3_ref = x3 * gamma3
    assert y3.shape == x3.shape and y3.dtype == x3.dtype
    assert jnp.allclose(y3, y3_ref, rtol=1e-6, atol=1e-6)

    print("KERNEL_OK")
</pallas_src>

<mosaic_0001>
module attributes {stable_mosaic.version = 11 : i64} {
  func.func @_layerscale_kernel(%arg0: i32, %arg1: memref<4x128xf32, #tpu.memory_space<vmem>>, %arg2: memref<1x128xf32, #tpu.memory_space<vmem>>, %arg3: memref<4x128xf32, #tpu.memory_space<vmem>>) attributes {dimension_semantics = [#tpu.dimension_semantics<parallel>], iteration_bounds = array<i64: 1>, scalar_prefetch = 0 : i64, scratch_operands = 0 : i64, tpu.core_type = #tpu.core_type<tc>, window_params = [{transform_indices = @transform_0, window_bounds = array<i64: 4, 128>}, {pipeline_mode = #tpu.pipeline_mode<synchronous>, transform_indices = @transform_1, window_bounds = array<i64: 1, 128>}, {transform_indices = @transform_2, window_bounds = array<i64: 4, 128>}]} {
    %c0 = arith.constant 0 : index
    %c0_0 = arith.constant 0 : index
    %0 = vector.load %arg1[%c0, %c0_0] : memref<4x128xf32, #tpu.memory_space<vmem>>, vector<4x128xf32>
    %c0_1 = arith.constant 0 : index
    %c0_2 = arith.constant 0 : index
    %1 = vector.load %arg2[%c0_1, %c0_2] : memref<1x128xf32, #tpu.memory_space<vmem>>, vector<1x128xf32>
    %2 = vector.broadcast %1 : vector<1x128xf32> to vector<4x128xf32>
    %3 = arith.mulf %0, %2 : vector<4x128xf32>
    %c0_3 = arith.constant 0 : index
    %c0_4 = arith.constant 0 : index
    %4 = vector.load %arg3[%c0_3, %c0_4] : memref<4x128xf32, #tpu.memory_space<vmem>>, vector<4x128xf32>
    tpu.vector_store %arg3[%c0_3, %c0_4], %3 {strides = array<i32>} : memref<4x128xf32, #tpu.memory_space<vmem>>, vector<4x128xf32>,
    return
  }
  func.func @transform_0(%arg0: i32) -> (i32, i32) {
    %c0_i32 = arith.constant 0 : i32
    %c0_i32_0 = arith.constant 0 : i32
    return %arg0, %c0_i32 : i32, i32
  }
  func.func @transform_1(%arg0: i32) -> (i32, i32) {
    %c0_i32 = arith.constant 0 : i32
    %c0_i32_0 = arith.constant 0 : i32
    %c0_i32_1 = arith.constant 0 : i32
    return %c0_i32, %c0_i32_0 : i32, i32
  }
  func.func @transform_2(%arg0: i32) -> (i32, i32) {
    %c0_i32 = arith.constant 0 : i32
    %c0_i32_0 = arith.constant 0 : i32
    return %arg0, %c0_i32 : i32, i32
  }
}

</mosaic_0001>

<llo_original>
// kernel: tpu_custom_call.1
$region0: #{tpu_custom_call.1}
  #allocation0 [shape = 'u32[]', space=smem, size = 0x4, offset = 0x4, fixed_abs, tag = 'smem constant byte address 0x4 - core index']
  #allocation1 [shape = 'u32[144,128]{1,0:T(1,128)}', space=vmem, size = 0x12000, scoped, tag = 'internal scratch']
  %s0 = inlined_call_operand.hbm [shape: f32[4,128], index: 0, kind: input, shape index: {}]
  %s1 = inlined_call_operand.vmem [shape: f32[1,128], index: 1, kind: input, shape index: {}]
  %s2 = inlined_call_operand.hbm [shape: f32[4,128], index: 2, kind: output, shape index: {}]
  %s3 = sld [smem:[#allocation0]]
  $region22: #{tpu_custom_call.1} parent=0
    _
  %s5 = ssub.s32 1, %s3
  %s6 = scalar_select 0, %s5, %s3
  $region1: #{tpu_custom_call.1} parent=0
    #allocation2 [shape = 'u8[2048]{0}', space=vmem, size = 0x800, scoped, tag = 'input window, operand 0, single buffered']
    #allocation3 [shape = 's32[1]{0}', space=sflag, size = 0x4, scoped, tag = 'scoped memory for tpu_custom_call.1']
    #allocation4 [shape = 's32[1]{0}', space=sflag, size = 0x4, scoped, tag = 'scoped memory for tpu_custom_call.1']
    #allocation5 [shape = 'u8[2048]{0}', space=vmem, size = 0x800, scoped, tag = 'output window, operand 0, single buffered']
    %7 = vsyncpa [#allocation3], 0
    %8 = vsyncpa [#allocation4], 0
    // Predicated region
    $region2: #{tpu_custom_call.1} parent=1 // pred_check
      _
    $region3: #{tpu_custom_call.1} parent=1 // pred_check_branch
      %10 = sbr.rel (0) target = $region5
    $region4: #{tpu_custom_call.1} parent=1 // pred_region
      %s12 = ssub.s32 64, 64
      %13 = vsyncadd [#allocation3], %s12
      %s15 = sshll.u32 [#allocation2], 4
      %s16 = int_to_ptr.vmem [resolvable:$true] %s15
      %18 = dma.hbm_to_vmem [thread:$0]  %s0, 64, %s16, [#allocation3]
    $region5: #{tpu_custom_call.1} parent=1 // pred_fallthru
      _
    // Predicated region
    $region6: #{tpu_custom_call.1} parent=1 // pred_check
      _
    $region7: #{tpu_custom_call.1} parent=1 // pred_check_branch
      %20 = sbr.rel (0) target = $region9
    $region8: #{tpu_custom_call.1} parent=1 // pred_region
      _
    $region9: #{tpu_custom_call.1} parent=1 // pred_fallthru
      _
    // Predicated region
    $region10: #{tpu_custom_call.1} parent=1 // pred_check
      _
    $region11: #{tpu_custom_call.1} parent=1 // pred_check_branch
      %22 = sbr.rel (0) target = $region13
    $region12: #{tpu_custom_call.1} parent=1 // pred_region
      %23 = dma.done [#allocation3], 64
    $region13: #{tpu_custom_call.1} parent=1 // pred_fallthru
      _
    %v24 = vld [vmem:[#allocation2] sm:$0xf]
    %v25 = vld [vmem:[%s1] sm:$0x1]
    %v27 = vlaneseq
    %v28 = vshrl.u32 %v27, 7
    %v29 = vsub.s32 0, %v28
    %v30 = vrot.slane %v25, %v29
    %v32 = vmul.f32 %v24, %v30
    %33 = vst [vmem:[#allocation5] sm:$0xf] %v32
    // Predicated region
    $region14: #{tpu_custom_call.1} parent=1 // pred_check
      _
    $region15: #{tpu_custom_call.1} parent=1 // pred_check_branch
      %35 = sbr.rel (0) target = $region17
    $region16: #{tpu_custom_call.1} parent=1 // pred_region
      %s37 = ssub.s32 64, 64
      %38 = vsyncadd [#allocation4], %s37
      %s40 = sshll.u32 [#allocation5], 4
      %s41 = int_to_ptr.vmem [resolvable:$true] %s40
      %43 = dma.vmem_to_hbm [thread:$0]  %s41, 64, %s2, [#allocation4]
    $region17: #{tpu_custom_call.1} parent=1 // pred_fallthru
      _
    // Predicated region
    $region18: #{tpu_custom_call.1} parent=1 // pred_check
      _
    $region19: #{tpu_custom_call.1} parent=1 // pred_check_branch
      %45 = sbr.rel (0) target = $region21
    $region20: #{tpu_custom_call.1} parent=1 // pred_region
      %46 = dma.done [#allocation4], 64
    $region21: #{tpu_custom_call.1} parent=1 // pred_fallthru
      _
    %47 = vsyncpa [#allocation3], 1
    %48 = vsyncpa [#allocation4], 1

</llo_original>
